<compile_context>
chip_gen: v6e
topology: v6e:2x2x1
jax: 0.10.0
libtpu: 0.0.40
codegen_flags: <defaults>
</compile_context>

<pallas_src>
import jax
import jax.numpy as jnp
from jax.experimental import pallas as pl
from jax.experimental.pallas import tpu as pltpu


ROW_ALIGN = 256         # tile_m granularity (MXU-friendly on all generations)
MAX_TILE_M = 2048       # hard cap on rows per grid step


def _round_up(v, m):
    return ((v + m - 1) // m) * m


def _resadd_linear_kernel(x_ref, w_ref, b_ref, o_ref):
    """Fused: o = x @ W + b + x  (f32 accumulation, residual added in f32)."""
    x = x_ref[...]                                                    # [tm, D]
    y = jnp.dot(x, w_ref[...], preferred_element_type=jnp.float32)   # MXU matmul
    y = y + b_ref[...].astype(jnp.float32)                           # bias [1, D]
    o_ref[...] = (y + x.astype(jnp.float32)).astype(o_ref.dtype)     # residual


def _scoped_vmem_limit_bytes():
    """Generation-aware scoped VMEM limit: 64 MiB on v5e/v6e (128 MiB physical),
    32 MiB on v7x (64 MiB physical per TensorCore)."""
    try:
        phys = int(pltpu.get_tpu_info().vmem_capacity_bytes)
    except Exception:
        phys = 64 * 1024 * 1024   # conservative (v7x-sized) default
    return max(16 * 1024 * 1024, min(64 * 1024 * 1024, phys // 2))


def res_add_linear(x, w, b, *, tile_m=None):
    """ResAdd(Linear)(x) for x of shape [B, N, D]; returns [B, N, D] in x.dtype.

    The I/O dtype follows the caller's x/w/b dtype (pass bf16 activations for
    halved HBM traffic); the matmul accumulator and residual add remain f32.
    """
    B, N, D = x.shape
    out_dtype = x.dtype
    M = B * N

    itemsize = jnp.dtype(x.dtype).itemsize
    out_itemsize = jnp.dtype(out_dtype).itemsize
    sublane = 16 if itemsize == 2 else 8

    vmem_limit = _scoped_vmem_limit_bytes()

    if tile_m is None:
        # Budget the pipelined tiles (2 bufs of x + 2 bufs of out) against the
        # scoped limit, minus the resident (double-buffered) weight/bias blocks,
        # keeping ~25% headroom for compiler-internal scratch.
        budget = (vmem_limit * 3) // 4
        resident = 2 * (D * D + D) * jnp.dtype(w.dtype).itemsize
        row_bytes = 2 * D * itemsize + 2 * D * out_itemsize
        avail = max(budget - resident, row_bytes * sublane)
        tile_m = max(sublane, min(avail // row_bytes, MAX_TILE_M))
        if tile_m >= ROW_ALIGN:
            tile_m = (tile_m // ROW_ALIGN) * ROW_ALIGN
        else:
            tile_m = max(sublane, (tile_m // sublane) * sublane)
        # TODO(synk): for very large D (>~2048 f32) also split the weight's N dim
        # across a second ("arbitrary") grid axis so the resident block fits VMEM;
        # not needed for TransUNet hidden sizes.

    # Don't make the block bigger than the (sublane-rounded) row count.
    tile_m = min(tile_m, _round_up(M, sublane))

    x2 = x.reshape(M, D)          # free reshape (contiguous), no extra HBM pass
    b2 = b.reshape(1, D)

    grid = (pl.cdiv(M, tile_m),)  # ragged last block: OOB reads harmless (row-wise
                                  # op), OOB writes are discarded by Pallas.

    cost = pl.CostEstimate(
        flops=2 * M * D * D,
        transcendentals=0,
        bytes_accessed=(M * D * itemsize            # x read
                        + M * D * out_itemsize      # out write
                        + (D * D + D) * jnp.dtype(w.dtype).itemsize),
    )

    out = pl.pallas_call(
        _resadd_linear_kernel,
        out_shape=jax.ShapeDtypeStruct((M, D), out_dtype),
        grid_spec=pltpu.PrefetchScalarGridSpec(
            num_scalar_prefetch=0,
            grid=grid,
            in_specs=[
                pl.BlockSpec((tile_m, D), lambda i: (i, 0)),  # x rows (pipelined)
                pl.BlockSpec((D, D), lambda i: (0, 0)),       # weight (resident)
                pl.BlockSpec((1, D), lambda i: (0, 0)),       # bias   (resident)
            ],
            out_specs=pl.BlockSpec((tile_m, D), lambda i: (i, 0)),
        ),
        compiler_params=pltpu.CompilerParams(
            dimension_semantics=("parallel",),   # rows shard across TCs (v7x)
            vmem_limit_bytes=vmem_limit,
        ),
        cost_estimate=cost,
    )(x2, w, b2)

    return out.reshape(B, N, D)


if __name__ == "__main__":
    # Small shapes consistent with the module's forward on token tensors [B, N, D].
    B, N, D = 2, 8, 32

    key = jax.random.PRNGKey(0)
    kx, kw, kb = jax.random.split(key, 3)

    x = jax.random.normal(kx, (B, N, D), dtype=jnp.float32)
    # Deterministic synthetic parameters for fn = Linear(D, D).
    w = jax.random.normal(kw, (D, D), dtype=jnp.float32) * 0.05
    b = jax.random.normal(kb, (D,), dtype=jnp.float32) * 0.01

    # Pure-JAX reference: fn(x) + x
    ref = jnp.einsum("bnd,de->bne", x, w) + b + x

    # f32 path
    out = jax.block_until_ready(res_add_linear(x, w, b))
    assert out.shape == x.shape and out.dtype == x.dtype
    assert jnp.allclose(out, ref, atol=1e-5, rtol=1e-5)

    # bf16 path: caller supplies bf16 activations/params; output is bf16 too
    # (bf16-in/bf16-out -> ~4 B/elem of HBM traffic vs 8 B/elem for f32).
    x_bf, w_bf, b_bf = (t.astype(jnp.bfloat16) for t in (x, w, b))
    out_bf = jax.block_until_ready(res_add_linear(x_bf, w_bf, b_bf))
    assert out_bf.shape == x.shape and out_bf.dtype == jnp.bfloat16
    ref_bf = (jnp.einsum("bnd,de->bne",
                         x_bf.astype(jnp.float32), w_bf.astype(jnp.float32))
              + b_bf.astype(jnp.float32) + x_bf.astype(jnp.float32))
    assert jnp.allclose(out_bf.astype(jnp.float32), ref_bf, atol=5e-2, rtol=5e-2)

    print("KERNEL_OK")
</pallas_src>

<mosaic_0001>
module attributes {stable_mosaic.version = 11 : i64} {
  func.func @_resadd_linear_kernel(%arg0: i32, %arg1: memref<16x32xf32, #tpu.memory_space<vmem>>, %arg2: memref<32x32xf32, #tpu.memory_space<vmem>>, %arg3: memref<1x32xf32, #tpu.memory_space<vmem>>, %arg4: memref<16x32xf32, #tpu.memory_space<vmem>>) attributes {dimension_semantics = [#tpu.dimension_semantics<parallel>], iteration_bounds = array<i64: 1>, scalar_prefetch = 0 : i64, scratch_operands = 0 : i64, tpu.core_type = #tpu.core_type<tc>, window_params = [{transform_indices = @transform_0, window_bounds = array<i64: 16, 32>}, {pipeline_mode = #tpu.pipeline_mode<synchronous>, transform_indices = @transform_1, window_bounds = array<i64: 32, 32>}, {pipeline_mode = #tpu.pipeline_mode<synchronous>, transform_indices = @transform_2, window_bounds = array<i64: 1, 32>}, {transform_indices = @transform_3, window_bounds = array<i64: 16, 32>}]} {
    %c0 = arith.constant 0 : index
    %c0_0 = arith.constant 0 : index
    %0 = vector.load %arg1[%c0, %c0_0] : memref<16x32xf32, #tpu.memory_space<vmem>>, vector<16x32xf32>
    %c0_1 = arith.constant 0 : index
    %c0_2 = arith.constant 0 : index
    %1 = vector.load %arg2[%c0_1, %c0_2] : memref<32x32xf32, #tpu.memory_space<vmem>>, vector<32x32xf32>
    %cst = arith.constant dense<0.000000e+00> : vector<16x32xf32>
    %2 = tpu.matmul %0, %1, %cst {dimension_numbers = #tpu.dot_dimension_numbers<[1], [0], [0], [1], [0, 0, 1, 1], [], []>} : vector<16x32xf32>, vector<32x32xf32>, vector<16x32xf32> -> vector<16x32xf32>
    %c0_3 = arith.constant 0 : index
    %c0_4 = arith.constant 0 : index
    %3 = vector.load %arg3[%c0_3, %c0_4] : memref<1x32xf32, #tpu.memory_space<vmem>>, vector<1x32xf32>
    %4 = vector.broadcast %3 : vector<1x32xf32> to vector<16x32xf32>
    %5 = arith.addf %2, %4 : vector<16x32xf32>
    %6 = arith.addf %5, %0 : vector<16x32xf32>
    %c0_5 = arith.constant 0 : index
    %c0_6 = arith.constant 0 : index
    %7 = vector.load %arg4[%c0_5, %c0_6] : memref<16x32xf32, #tpu.memory_space<vmem>>, vector<16x32xf32>
    tpu.vector_store %arg4[%c0_5, %c0_6], %6 {strides = array<i32>} : memref<16x32xf32, #tpu.memory_space<vmem>>, vector<16x32xf32>,
    return
  }
  func.func @transform_0(%arg0: i32) -> (i32, i32) {
    %c0_i32 = arith.constant 0 : i32
    %c0_i32_0 = arith.constant 0 : i32
    return %arg0, %c0_i32 : i32, i32
  }
  func.func @transform_1(%arg0: i32) -> (i32, i32) {
    %c0_i32 = arith.constant 0 : i32
    %c0_i32_0 = arith.constant 0 : i32
    %c0_i32_1 = arith.constant 0 : i32
    return %c0_i32, %c0_i32_0 : i32, i32
  }
  func.func @transform_2(%arg0: i32) -> (i32, i32) {
    %c0_i32 = arith.constant 0 : i32
    %c0_i32_0 = arith.constant 0 : i32
    %c0_i32_1 = arith.constant 0 : i32
    return %c0_i32, %c0_i32_0 : i32, i32
  }
  func.func @transform_3(%arg0: i32) -> (i32, i32) {
    %c0_i32 = arith.constant 0 : i32
    %c0_i32_0 = arith.constant 0 : i32
    return %arg0, %c0_i32 : i32, i32
  }
}

</mosaic_0001>

<llo_original>
// kernel: tpu_custom_call.1
$region0: #{tpu_custom_call.1}
  #allocation0 [shape = 'u32[]', space=smem, size = 0x4, offset = 0x4, fixed_abs, tag = 'smem constant byte address 0x4 - core index']
  #allocation1 [shape = 'u32[144,128]{1,0:T(1,128)}', space=vmem, size = 0x12000, scoped, tag = 'internal scratch']
  %s0 = inlined_call_operand.hbm [shape: f32[16,32], index: 0, kind: input, shape index: {}]
  %s1 = inlined_call_operand.hbm [shape: f32[32,32], index: 1, kind: input, shape index: {}]
  %s2 = inlined_call_operand.vmem [shape: f32[1,32], index: 2, kind: input, shape index: {}]
  %s3 = inlined_call_operand.hbm [shape: f32[16,32], index: 3, kind: output, shape index: {}]
  %s4 = sld [smem:[#allocation0]]
  $region30: #{tpu_custom_call.1} parent=0
    _
  %s6 = ssub.s32 1, %s4
  %s7 = scalar_select 0, %s6, %s4
  $region1: #{tpu_custom_call.1} parent=0
    #allocation2 [shape = 'u8[8192]{0}', space=vmem, size = 0x2000, scoped, tag = 'input window, operand 0, single buffered']
    #allocation3 [shape = 's32[1]{0}', space=sflag, size = 0x4, scoped, tag = 'scoped memory for tpu_custom_call.1']
    #allocation4 [shape = 's32[1]{0}', space=sflag, size = 0x4, scoped, tag = 'scoped memory for tpu_custom_call.1']
    #allocation5 [shape = 'u8[16384]{0}', space=vmem, size = 0x4000, scoped, tag = 'input window, operand 1, single buffered']
    #allocation6 [shape = 's32[1]{0}', space=sflag, size = 0x4, scoped, tag = 'scoped memory for tpu_custom_call.1']
    #allocation7 [shape = 'u8[8192]{0}', space=vmem, size = 0x2000, scoped, tag = 'output window, operand 0, single buffered']
    %8 = vsyncpa [#allocation3], 0
    %9 = vsyncpa [#allocation6], 0
    %10 = vsyncpa [#allocation4], 0
    // Predicated region
    $region2: #{tpu_custom_call.1} parent=1 // pred_check
      _
    $region3: #{tpu_custom_call.1} parent=1 // pred_check_branch
      %12 = sbr.rel (0) target = $region5
    $region4: #{tpu_custom_call.1} parent=1 // pred_region
      %s14 = ssub.s32 256, 256
      %15 = vsyncadd [#allocation3], %s14
      %s16 = sshll.u32 [#allocation2], 4
      %s17 = int_to_ptr.vmem [resolvable:$true] %s16
      %22 = dma.hbm_to_vmem [thread:$0]  %s0, 256, %s17, [#allocation3], 128, 128, 8
    $region5: #{tpu_custom_call.1} parent=1 // pred_fallthru
      _
    // Predicated region
    $region6: #{tpu_custom_call.1} parent=1 // pred_check
      _
    $region7: #{tpu_custom_call.1} parent=1 // pred_check_branch
      %24 = sbr.rel (0) target = $region9
    $region8: #{tpu_custom_call.1} parent=1 // pred_region
      %s26 = ssub.s32 512, 512
      %27 = vsyncadd [#allocation6], %s26
      %s28 = sshll.u32 [#allocation5], 4
      %s29 = int_to_ptr.vmem [resolvable:$true] %s28
      %34 = dma.hbm_to_vmem [thread:$0]  %s1, 512, %s29, [#allocation6], 128, 128, 8
    $region9: #{tpu_custom_call.1} parent=1 // pred_fallthru
      _
    // Predicated region
    $region10: #{tpu_custom_call.1} parent=1 // pred_check
      _
    $region11: #{tpu_custom_call.1} parent=1 // pred_check_branch
      %36 = sbr.rel (0) target = $region13
    $region12: #{tpu_custom_call.1} parent=1 // pred_region
      _
    $region13: #{tpu_custom_call.1} parent=1 // pred_fallthru
      _
    // Predicated region
    $region14: #{tpu_custom_call.1} parent=1 // pred_check
      _
    $region15: #{tpu_custom_call.1} parent=1 // pred_check_branch
      %38 = sbr.rel (0) target = $region17
    $region16: #{tpu_custom_call.1} parent=1 // pred_region
      %39 = dma.done [#allocation3], 256
    $region17: #{tpu_custom_call.1} parent=1 // pred_fallthru
      _
    // Predicated region
    $region18: #{tpu_custom_call.1} parent=1 // pred_check
      _
    $region19: #{tpu_custom_call.1} parent=1 // pred_check_branch
      %41 = sbr.rel (0) target = $region21
    $region20: #{tpu_custom_call.1} parent=1 // pred_region
      %42 = dma.done [#allocation6], 512
    $region21: #{tpu_custom_call.1} parent=1 // pred_fallthru
      _
    %v43 = vld [vmem:[#allocation2] sm:$0xff]
    %v44 = vld [vmem:[#allocation2 + $0x8] sm:$0xff]
    %v45 = vld [vmem:[#allocation5] sm:$0xff]
    %v46 = vld [vmem:[#allocation5 + $0x8] sm:$0xff]
    %v47 = vld [vmem:[#allocation5 + $0x10] sm:$0xff]
    %v48 = vld [vmem:[#allocation5 + $0x18] sm:$0xff]
    %v49 = vld [vmem:[%s2] sm:$0x1]
    %v51 = vlaneseq
    %v52 = vshrl.u32 %v51, 7
    %v53 = vsub.s32 0, %v52
    %v54 = vrot.slane %v49, %v53
    %vm56 = vcmask 261120
    %v58 = vsel %vm56, %v43, 0
    %v61 = vsel %vm56, %v44, 0
    %63 = vmatprep.subr.mxu0 0.0
    %64 = vmatpush1.msra.mxu0 0.0
    %65 = vmatprep.subr.mxu0 0.0
    %66 = vmatpush1.msra.mxu0 0.0
    %67 = vmatprep.subr.mxu0 0.0
    %68 = vmatpush1.msra.mxu0 0.0
    %69 = vmatprep.subr.mxu0 0.0
    %70 = vmatpush1.msra.mxu0 0.0
    %71 = vmatprep.subr.mxu0 0.0
    %72 = vmatpush1.msra.mxu0 0.0
    %73 = vmatprep.subr.mxu0 0.0
    %74 = vmatpush1.msra.mxu0 0.0
    %75 = vmatprep.subr.mxu0 0.0
    %76 = vmatpush1.msra.mxu0 0.0
    %77 = vmatprep.subr.mxu0 0.0
    %78 = vmatpush1.msra.mxu0 0.0
    %79 = vmatprep.subr.mxu0 0.0
    %80 = vmatpush1.msra.mxu0 0.0
    %81 = vmatprep.subr.mxu0 0.0
    %82 = vmatpush1.msra.mxu0 0.0
    %83 = vmatprep.subr.mxu0 0.0
    %84 = vmatpush1.msra.mxu0 0.0
    %85 = vmatprep.subr.mxu0 0.0
    %86 = vmatpush1.msra.mxu0 0.0
    %87 = vmatprep.subr.mxu0 0.0
    %88 = vmatpush1.msra.mxu0 %v48
    %89 = vmatprep.subr.mxu0 0.0
    %90 = vmatpush1.msra.mxu0 %v47
    %91 = vmatprep.subr.mxu0 0.0
    %92 = vmatpush1.msra.mxu0 %v46
    %93 = vmatprep.subr.mxu0 0.0
    %94 = vmatpush1.msra.mxu0 %v45
    %95 = vmatprep.subr.mxu0 0.0
    %96 = vmatpush2.msra.mxu0 0.0
    %97 = vmatprep.subr.mxu0 0.0
    %98 = vmatpush2.msra.mxu0 0.0
    %99 = vmatprep.subr.mxu0 0.0
    %100 = vmatpush2.msra.mxu0 0.0
    %101 = vmatprep.subr.mxu0 0.0
    %102 = vmatpush2.msra.mxu0 0.0
    %103 = vmatprep.subr.mxu0 0.0
    %104 = vmatpush2.msra.mxu0 0.0
    %105 = vmatprep.subr.mxu0 0.0
    %106 = vmatpush2.msra.mxu0 0.0
    %107 = vmatprep.subr.mxu0 0.0
    %108 = vmatpush2.msra.mxu0 0.0
    %109 = vmatprep.subr.mxu0 0.0
    %110 = vmatpush2.msra.mxu0 0.0
    %111 = vmatprep.subr.mxu0 0.0
    %112 = vmatpush2.msra.mxu0 0.0
    %113 = vmatprep.subr.mxu0 0.0
    %114 = vmatpush2.msra.mxu0 0.0
    %115 = vmatprep.subr.mxu0 0.0
    %116 = vmatpush2.msra.mxu0 0.0
    %117 = vmatprep.subr.mxu0 0.0
    %118 = vmatpush2.msra.mxu0 0.0
    %119 = vmatprep.subr.mxu0 0.0
    %120 = vmatpush2.msra.mxu0 0.0
    %121 = vmatprep.subr.mxu0 0.0
    %122 = vmatpush2.msra.mxu0 0.0
    %123 = vmatprep.subr.mxu0 0.0
    %124 = vmatpush2.msra.mxu0 0.0
    %125 = vmatprep.subr.mxu0 0.0
    %126 = vmatpush2.msra.mxu0 0.0
    %127 = vmatprep.mubr.f32.mxu0 0.0
    %128 = vmatmul.mubr.f32.gmra.mxu0 %v58
    %v129 = vpop.f32.mrf.mxu0
    %v130 = vadd.f32 %v54, %v129
    %v131 = vpop.f32.mrf.mxu0
    %132 = vmatprep.mubr.f32.mxu0 0.0
    %133 = vmatmul.mubr.f32.gmra.mxu0 %v61
    %v134 = vpop.f32.mrf.mxu0
    %v135 = vadd.f32 %v54, %v134
    %v136 = vpop.f32.mrf.mxu0
    %137 = vdwg.mxu0
    %v138 = vadd.f32 %v130, %v43
    %v139 = vadd.f32 %v135, %v44
    %140 = vst.msk [vmem:[#allocation7] sm:$0xff] %vm56, %v138
    %141 = vst.msk [vmem:[#allocation7 + $0x8] sm:$0xff] %vm56, %v139
    // Predicated region
    $region22: #{tpu_custom_call.1} parent=1 // pred_check
      _
    $region23: #{tpu_custom_call.1} parent=1 // pred_check_branch
      %143 = sbr.rel (0) target = $region25
    $region24: #{tpu_custom_call.1} parent=1 // pred_region
      %s145 = ssub.s32 256, 256
      %146 = vsyncadd [#allocation4], %s145
      %s147 = sshll.u32 [#allocation7], 4
      %s148 = int_to_ptr.vmem [resolvable:$true] %s147
      %153 = dma.vmem_to_hbm [thread:$0]  %s148, 256, %s3, [#allocation4], 128, 128, 8
    $region25: #{tpu_custom_call.1} parent=1 // pred_fallthru
      _
    // Predicated region
    $region26: #{tpu_custom_call.1} parent=1 // pred_check
      _
    $region27: #{tpu_custom_call.1} parent=1 // pred_check_branch
      %155 = sbr.rel (0) target = $region29
    $region28: #{tpu_custom_call.1} parent=1 // pred_region
      %156 = dma.done [#allocation4], 256
    $region29: #{tpu_custom_call.1} parent=1 // pred_fallthru
      _
    %157 = vsyncpa [#allocation3], 1
    %158 = vsyncpa [#allocation6], 1
    %159 = vsyncpa [#allocation4], 1

</llo_original>
